<compile_context>
chip_gen: v5e
topology: v5e:2x2
jax: 0.10.0
libtpu: 0.0.40
codegen_flags: <defaults>
</compile_context>

<pallas_src>
import math
import functools

import jax
import jax.numpy as jnp
import numpy as np
from jax import lax
from jax.experimental import pallas as pl
from jax.experimental.pallas import tpu as pltpu


def _round_up(n, m):
    return ((n + m - 1) // m) * m


def _layer_norm_kernel(x_ref, w_ref, o_ref, *, eps):
    """LayerNorm over the last axis of a (rows_per_block, dim) tile.

    x_ref : VMEM (rows_per_block, dim), input dtype
    w_ref : VMEM (1, dim), float32 scale (constant block across the grid)
    o_ref : VMEM (rows_per_block, dim), float32 output
    """
    x = x_ref[...].astype(jnp.float32)              # matches x.float()
    mean = jnp.mean(x, axis=-1, keepdims=True)
    xc = x - mean
    var = jnp.mean(xc * xc, axis=-1, keepdims=True)
    inv = lax.rsqrt(var + eps)                      # EUP slot
    o_ref[...] = (xc * inv) * w_ref[...]            # (1, dim) broadcasts


def layer_norm_forward(x, weight, *, eps=1e-5, rows_per_block=256):
    """x: (..., dim); weight: (dim,). Returns float32 array of x.shape."""
    *lead, dim = x.shape
    assert weight.shape == (dim,)
    n_rows = int(np.prod(lead)) if lead else 1

    # Large, sublane-aligned row blocks; shrink for tiny inputs.
    block_rows = min(rows_per_block, _round_up(n_rows, 8))
    n_padded = _round_up(n_rows, block_rows)

    x_flat = x.reshape(n_rows, dim)
    if n_padded != n_rows:
        # Zero rows are safe: mean=0, var=0, rsqrt(eps) finite -> output 0.
        x_flat = jnp.pad(x_flat, ((0, n_padded - n_rows), (0, 0)))
    w2d = weight.astype(jnp.float32).reshape(1, dim)

    grid = (n_padded // block_rows,)

    # VMEM budget: double-buffered input + output tiles, f32 temporaries,
    # resident weight, plus headroom.
    block_bytes = block_rows * dim * 4
    vmem_bytes = min(100 * 1024 * 1024,
                     max(8 * block_bytes + (1 << 20), 4 * 1024 * 1024))

    grid_spec = pltpu.PrefetchScalarGridSpec(
        num_scalar_prefetch=0,
        grid=grid,
        in_specs=[
            pl.BlockSpec((block_rows, dim), lambda i: (i, 0)),
            pl.BlockSpec((1, dim), lambda i: (0, 0)),   # constant weight block
        ],
        out_specs=pl.BlockSpec((block_rows, dim), lambda i: (i, 0)),
    )

    out_flat = pl.pallas_call(
        functools.partial(_layer_norm_kernel, eps=eps),
        out_shape=jax.ShapeDtypeStruct((n_padded, dim), jnp.float32),
        grid_spec=grid_spec,
        compiler_params=pltpu.CompilerParams(
            dimension_semantics=("parallel",),          # 2x on v7x megacore
            vmem_limit_bytes=vmem_bytes),
    )(x_flat, w2d)

    out = out_flat[:n_rows]
    return out.reshape(*lead, dim)


if __name__ == "__main__":
    key = jax.random.PRNGKey(0)
    k_x, k_w = jax.random.split(key)

    batch, seq, dim = 2, 8, 128

    x = jax.random.normal(k_x, (batch, seq, dim), dtype=jnp.float32) * 3.0 + 1.5
    # Module initializes weight to ones; use a non-trivial scale to exercise
    # the affine multiply as well.
    weight = 1.0 + 0.1 * jax.random.normal(k_w, (dim,), dtype=jnp.float32)

    out = layer_norm_forward(x, weight)
    out = jax.block_until_ready(out)

    # Reference: plain JAX layer norm (eps = 1e-5, same as F.layer_norm).
    x32 = x.astype(jnp.float32)
    mean = x32.mean(axis=-1, keepdims=True)
    var = ((x32 - mean) ** 2).mean(axis=-1, keepdims=True)
    ref = (x32 - mean) / jnp.sqrt(var + 1e-5) * weight[None, None, :]

    np.testing.assert_allclose(np.asarray(out), np.asarray(ref),
                               rtol=1e-5, atol=1e-5)

    print("KERNEL_OK")
</pallas_src>

<mosaic_0001>
module attributes {stable_mosaic.version = 11 : i64} {
  func.func @_layer_norm_kernel(%arg0: i32, %arg1: memref<16x128xf32, #tpu.memory_space<vmem>>, %arg2: memref<1x128xf32, #tpu.memory_space<vmem>>, %arg3: memref<16x128xf32, #tpu.memory_space<vmem>>) attributes {dimension_semantics = [#tpu.dimension_semantics<parallel>], iteration_bounds = array<i64: 1>, scalar_prefetch = 0 : i64, scratch_operands = 0 : i64, tpu.core_type = #tpu.core_type<tc>, window_params = [{transform_indices = @transform_0, window_bounds = array<i64: 16, 128>}, {pipeline_mode = #tpu.pipeline_mode<synchronous>, transform_indices = @transform_1, window_bounds = array<i64: 1, 128>}, {transform_indices = @transform_2, window_bounds = array<i64: 16, 128>}]} {
    %c0 = arith.constant 0 : index
    %c0_0 = arith.constant 0 : index
    %0 = vector.load %arg1[%c0, %c0_0] : memref<16x128xf32, #tpu.memory_space<vmem>>, vector<16x128xf32>
    %cst = arith.constant dense<0.000000e+00> : vector<16xf32>
    %1 = vector.multi_reduction <add>, %0, %cst [1] : vector<16x128xf32> to vector<16xf32>
    %2 = vector.shape_cast %1 : vector<16xf32> to vector<16x1xf32>
    %cst_1 = arith.constant 1.280000e+02 : f32
    %3 = vector.broadcast %cst_1 : f32 to vector<16x1xf32>
    %4 = arith.divf %2, %3 : vector<16x1xf32>
    %5 = vector.broadcast %4 : vector<16x1xf32> to vector<16x128xf32>
    %6 = arith.subf %0, %5 : vector<16x128xf32>
    %7 = arith.mulf %6, %6 : vector<16x128xf32>
    %cst_2 = arith.constant dense<0.000000e+00> : vector<16xf32>
    %8 = vector.multi_reduction <add>, %7, %cst_2 [1] : vector<16x128xf32> to vector<16xf32>
    %9 = vector.shape_cast %8 : vector<16xf32> to vector<16x1xf32>
    %cst_3 = arith.constant 1.280000e+02 : f32
    %10 = vector.broadcast %cst_3 : f32 to vector<16x1xf32>
    %11 = arith.divf %9, %10 : vector<16x1xf32>
    %cst_4 = arith.constant 9.99999974E-6 : f32
    %12 = vector.broadcast %cst_4 : f32 to vector<16x1xf32>
    %13 = arith.addf %11, %12 : vector<16x1xf32>
    %14 = math.rsqrt %13 : vector<16x1xf32>
    %15 = vector.broadcast %14 : vector<16x1xf32> to vector<16x128xf32>
    %16 = arith.mulf %6, %15 : vector<16x128xf32>
    %c0_5 = arith.constant 0 : index
    %c0_6 = arith.constant 0 : index
    %17 = vector.load %arg2[%c0_5, %c0_6] : memref<1x128xf32, #tpu.memory_space<vmem>>, vector<1x128xf32>
    %18 = vector.broadcast %17 : vector<1x128xf32> to vector<16x128xf32>
    %19 = arith.mulf %16, %18 : vector<16x128xf32>
    %c0_7 = arith.constant 0 : index
    %c0_8 = arith.constant 0 : index
    %20 = vector.load %arg3[%c0_7, %c0_8] : memref<16x128xf32, #tpu.memory_space<vmem>>, vector<16x128xf32>
    tpu.vector_store %arg3[%c0_7, %c0_8], %19 {strides = array<i32>} : memref<16x128xf32, #tpu.memory_space<vmem>>, vector<16x128xf32>,
    return
  }
  func.func @transform_0(%arg0: i32) -> (i32, i32) {
    %c0_i32 = arith.constant 0 : i32
    %c0_i32_0 = arith.constant 0 : i32
    return %arg0, %c0_i32 : i32, i32
  }
  func.func @transform_1(%arg0: i32) -> (i32, i32) {
    %c0_i32 = arith.constant 0 : i32
    %c0_i32_0 = arith.constant 0 : i32
    %c0_i32_1 = arith.constant 0 : i32
    return %c0_i32, %c0_i32_0 : i32, i32
  }
  func.func @transform_2(%arg0: i32) -> (i32, i32) {
    %c0_i32 = arith.constant 0 : i32
    %c0_i32_0 = arith.constant 0 : i32
    return %arg0, %c0_i32 : i32, i32
  }
}

</mosaic_0001>

<llo_original>
// kernel: tpu_custom_call.1
$region0: #{tpu_custom_call.1}
  #allocation0 [shape = 'u32[]', space=smem, size = 0x4, offset = 0x4, fixed_abs, tag = 'smem constant byte address 0x4 - core index']
  #allocation1 [shape = 'u32[72,128]{1,0:T(1,128)}', space=vmem, size = 0x9000, scoped, tag = 'internal scratch']
  %s0 = inlined_call_operand.hbm [shape: f32[16,128], index: 0, kind: input, shape index: {}]
  %s1 = inlined_call_operand.hbm [shape: f32[1,128], index: 1, kind: input, shape index: {}]
  %s2 = inlined_call_operand.hbm [shape: f32[16,128], index: 2, kind: output, shape index: {}]
  %s3 = sld [smem:[#allocation0]]
  $region26: #{tpu_custom_call.1} parent=0
    _
  %s5 = ssub.s32 1, %s3
  %s6 = scalar_select 0, %s5, %s3
  $region1: #{tpu_custom_call.1} parent=0
    #allocation2 [shape = 'u8[8192]{0}', space=vmem, size = 0x2000, scoped, tag = 'input window, operand 0, single buffered']
    #allocation3 [shape = 's32[1]{0}', space=sflag, size = 0x4, scoped, tag = 'scoped memory for tpu_custom_call.1']
    #allocation4 [shape = 's32[1]{0}', space=sflag, size = 0x4, scoped, tag = 'scoped memory for tpu_custom_call.1']
    #allocation5 [shape = 'u8[512]{0}', space=vmem, size = 0x400, scoped, tag = 'input window, operand 1, single buffered']
    #allocation6 [shape = 's32[1]{0}', space=sflag, size = 0x4, scoped, tag = 'scoped memory for tpu_custom_call.1']
    #allocation7 [shape = 'u8[8192]{0}', space=vmem, size = 0x2000, scoped, tag = 'output window, operand 0, single buffered']
    %7 = vsyncpa [#allocation3], 0
    %8 = vsyncpa [#allocation6], 0
    %9 = vsyncpa [#allocation4], 0
    // Predicated region
    $region2: #{tpu_custom_call.1} parent=1 // pred_check
      _
    $region3: #{tpu_custom_call.1} parent=1 // pred_check_branch
      %11 = sbr.rel (0) target = $region5
    $region4: #{tpu_custom_call.1} parent=1 // pred_region
      %13 = vsyncadd [#allocation3], 0
      %s14 = sshll.u32 %s0, 4
      %s15 = int_to_ptr.hbm [resolvable:$true] %s14
      %s16 = sshll.u32 [#allocation2], 4
      %s17 = int_to_ptr.vmem [resolvable:$true] %s16
      %22 = dma.hbm_to_vmem [thread:$0]  %s15, 256, %s17, [#allocation3], 128, 128, 8
    $region5: #{tpu_custom_call.1} parent=1 // pred_fallthru
      _
    // Predicated region
    $region6: #{tpu_custom_call.1} parent=1 // pred_check
      _
    $region7: #{tpu_custom_call.1} parent=1 // pred_check_branch
      %24 = sbr.rel (0) target = $region9
    $region8: #{tpu_custom_call.1} parent=1 // pred_region
      %26 = vsyncadd [#allocation6], 0
      %s28 = sshll.u32 %s1, 4
      %s29 = int_to_ptr.hbm [resolvable:$true] %s28
      %s30 = sshll.u32 [#allocation5], 4
      %s31 = int_to_ptr.vmem [resolvable:$true] %s30
      %33 = dma.hbm_to_vmem [thread:$0]  %s29, 16, %s31, [#allocation6]
    $region9: #{tpu_custom_call.1} parent=1 // pred_fallthru
      _
    // Predicated region
    $region10: #{tpu_custom_call.1} parent=1 // pred_check
      _
    $region11: #{tpu_custom_call.1} parent=1 // pred_check_branch
      %35 = sbr.rel (0) target = $region13
    $region12: #{tpu_custom_call.1} parent=1 // pred_region
      %37 = dma.done [#allocation3], 256
    $region13: #{tpu_custom_call.1} parent=1 // pred_fallthru
      _
    // Predicated region
    $region14: #{tpu_custom_call.1} parent=1 // pred_check
      _
    $region15: #{tpu_custom_call.1} parent=1 // pred_check_branch
      %39 = sbr.rel (0) target = $region17
    $region16: #{tpu_custom_call.1} parent=1 // pred_region
      %41 = dma.done [#allocation6], 16
    $region17: #{tpu_custom_call.1} parent=1 // pred_fallthru
      _
    %v42 = vld [vmem:[#allocation2] sm:$0xff]
    %v43 = vld [vmem:[#allocation2 + $0x8] sm:$0xff]
    %44 = vadd.xlane.f32.xlu0 %v42
    %v45 = vpop.xlane.xlu0 %44
    %46 = vadd.xlane.f32.xlu0 %v43
    %v47 = vpop.xlane.xlu0 %46
    %v48 = vrcp.pop 128.0
    %v49 = vmul.f32 128.0, %v48
    %v50 = vsub.f32 1.0, %v49
    %v51 = vmul.f32 %v48, %v50
    %v52 = vadd.f32 %v48, %v51
    %vm53 = vweird.f32 %v48
    %v54 = vsel %vm53, %v48, %v52
    %v55 = vmul.f32 %v45, %v54
    %v56 = vmul.f32 %v47, %v54
    %v57 = vsub.f32 %v42, %v55
    %v58 = vsub.f32 %v43, %v56
    %v59 = vmul.f32 %v57, %v57
    %v60 = vmul.f32 %v58, %v58
    %61 = vadd.xlane.f32.xlu0 %v59
    %v62 = vpop.xlane.xlu0 %61
    %63 = vadd.xlane.f32.xlu0 %v60
    %v64 = vpop.xlane.xlu0 %63
    %v65 = vmul.f32 %v62, %v54
    %v66 = vmul.f32 %v64, %v54
    %v67 = vadd.f32 %v65, 1e-05
    %v68 = vadd.f32 %v66, 1e-05
    %v69 = vrsqrt.pop %v67
    %v70 = vmul.f32 %v69, %v67
    %v71 = vmul.f32 %v70, %v69
    %v72 = vmul.f32 0.5, %v71
    %v73 = vsub.f32 1.5, %v72
    %v74 = vmul.f32 %v69, %v73
    %vm75 = vweird.f32 %v67
    %vm76 = vweird.f32 %v69
    %vm77 = vmor %vm75, %vm76
    %v78 = vsel %vm77, %v69, %v74
    %v79 = vrsqrt.pop %v68
    %v80 = vmul.f32 %v79, %v68
    %v81 = vmul.f32 %v80, %v79
    %v82 = vmul.f32 0.5, %v81
    %v83 = vsub.f32 1.5, %v82
    %v84 = vmul.f32 %v79, %v83
    %vm85 = vweird.f32 %v68
    %vm86 = vweird.f32 %v79
    %vm87 = vmor %vm85, %vm86
    %v88 = vsel %vm87, %v79, %v84
    %v89 = vmul.f32 %v57, %v78
    %v90 = vmul.f32 %v58, %v88
    %v91 = vld [vmem:[#allocation5] sm:$0x1]
    %v93 = vperm.slane %v91, 0
    %v95 = vmul.f32 %v89, %v93
    %v96 = vmul.f32 %v90, %v93
    %97 = vst [vmem:[#allocation7] sm:$0xff] %v95
    %98 = vst [vmem:[#allocation7 + $0x8] sm:$0xff] %v96
    // Predicated region
    $region18: #{tpu_custom_call.1} parent=1 // pred_check
      _
    $region19: #{tpu_custom_call.1} parent=1 // pred_check_branch
      %100 = sbr.rel (0) target = $region21
    $region20: #{tpu_custom_call.1} parent=1 // pred_region
      %102 = vsyncadd [#allocation4], 0
      %s103 = sshll.u32 [#allocation7], 4
      %s104 = int_to_ptr.vmem [resolvable:$true] %s103
      %s105 = sshll.u32 %s2, 4
      %s106 = int_to_ptr.hbm [resolvable:$true] %s105
      %111 = dma.vmem_to_hbm [thread:$0]  %s104, 256, %s106, [#allocation4], 128, 128, 8
    $region21: #{tpu_custom_call.1} parent=1 // pred_fallthru
      _
    // Predicated region
    $region22: #{tpu_custom_call.1} parent=1 // pred_check
      _
    $region23: #{tpu_custom_call.1} parent=1 // pred_check_branch
      %113 = sbr.rel (0) target = $region25
    $region24: #{tpu_custom_call.1} parent=1 // pred_region
      %115 = dma.done [#allocation4], 256
    $region25: #{tpu_custom_call.1} parent=1 // pred_fallthru
      _
    %116 = vsyncpa [#allocation3], 1
    %117 = vsyncpa [#allocation6], 1
    %118 = vsyncpa [#allocation4], 1

</llo_original>
